<compile_context>
chip_gen: v7x
topology: tpu7x:2x2x1
jax: 0.10.0
libtpu: 0.0.40
codegen_flags: <defaults>
</compile_context>

<pallas_src>
from functools import partial
import math

import numpy as np
import jax
import jax.numpy as jnp
from jax.experimental import pallas as pl
from jax.experimental.pallas import tpu as pltpu


# --------------------------------------------------------------------------
# host-side bilinear (align_corners=True) interpolation operators
# --------------------------------------------------------------------------
def bilinear_matrix(out_size, in_size):
    """(out_size, in_size) float64 1-D interp matrix matching
    F.interpolate(mode='bilinear', align_corners=True) along one axis."""
    A = np.zeros((out_size, in_size), dtype=np.float64)
    if in_size == 1:
        A[:, 0] = 1.0
        return A
    if out_size == 1:
        src = np.zeros((1,), dtype=np.float64)
    else:
        src = np.arange(out_size, dtype=np.float64) * (in_size - 1) / (out_size - 1)
    lo = np.clip(np.floor(src).astype(np.int64), 0, in_size - 1)
    hi = np.minimum(lo + 1, in_size - 1)
    frac = src - lo
    for i in range(out_size):
        A[i, lo[i]] += 1.0 - frac[i]
        A[i, hi[i]] += frac[i]
    return A


def combined_bilinear_matrix(H, W, H0, W0):
    """K (H*W, H0*W0) with K[h*W+w, g*W0+v] = Ay[g,h]*Ax[v,w].
    `fused(C, H*W) @ K` performs the full separable 2-D bilinear resize."""
    ay = bilinear_matrix(H0, H)                  # (H0, H)
    ax = bilinear_matrix(W0, W)                  # (W0, W)
    return np.kron(ay, ax).T.astype(np.float32)  # (H*W, H0*W0)


# --------------------------------------------------------------------------
# fused per-level kernel: 1x1 convs -> sigmoid gate -> residual -> bilinear
# resize, all on the lane-dense (C, pixels) NCHW view.
# --------------------------------------------------------------------------
def _level_kernel(x_ref, d_ref, wr_ref, br_ref, wd_ref, bd_ref, k_ref,
                  slab_ref, o_ref, acc_ref, *, group):
    del slab_ref  # aliased output buffer; never read inside the kernel
    gi = pl.program_id(1)

    # All heavy compute happens once per image (first channel-group step);
    # later steps only stream their channel group out of the VMEM scratch.
    @pl.when(gi == 0)
    def _():
        x = x_ref[0]                                       # (C, H*W)
        d = d_ref[0]                                       # (C, H*W)
        conv_r = jnp.dot(wr_ref[...], x,
                         preferred_element_type=jnp.float32) + br_ref[...]
        conv_d = jnp.dot(wd_ref[...], d,
                         preferred_element_type=jnp.float32) + bd_ref[...]
        gate = 1.0 / (1.0 + jnp.exp(-conv_d))              # sigmoid (EUP exp)
        fused = conv_r * gate + x                          # (C, H*W)
        # full bilinear resize as one matmul with K = kron(Ay, Ax)^T
        acc_ref[...] = jnp.dot(fused, k_ref[...],
                               preferred_element_type=jnp.float32)  # (C, H0*W0)

    start = pl.multiple_of(gi * group, group)
    o_ref[0] = acc_ref[pl.ds(start, group), :]             # lane-dense store


def msdam_level(rgb, dep, wr, br, wd, bd, slab, ch_start, group, H0, W0):
    """Fused DAM + bilinear upsample for one pyramid level.  Writes its result
    into channels [ch_start, ch_start+C) of `slab` (B, Ctot, H0*W0) in place
    via input_output_aliases, and returns the updated slab."""
    B, C, H, W = rgb.shape
    P = H * W
    assert C % group == 0 and ch_start % group == 0
    n_g = C // group

    x = rgb.reshape(B, C, P)                 # free row-major views of NCHW
    d = dep.reshape(B, C, P)
    K = jnp.asarray(combined_bilinear_matrix(H, W, H0, W0))   # (P, H0*W0)
    br2 = br.reshape(C, 1)
    bd2 = bd.reshape(C, 1)
    cb = ch_start // group                   # output channel-block base

    cost = pl.CostEstimate(
        flops=int(B * (4 * C * C * P + 6 * C * P + 2 * C * P * H0 * W0)),
        transcendentals=int(B * C * P),
        bytes_accessed=int(4 * (2 * B * C * P + B * C * H0 * W0
                                + 2 * C * C + 2 * C + P * H0 * W0)),
    )

    kernel = partial(_level_kernel, group=group)
    return pl.pallas_call(
        kernel,
        out_shape=jax.ShapeDtypeStruct(slab.shape, slab.dtype),
        grid_spec=pltpu.PrefetchScalarGridSpec(
            num_scalar_prefetch=0,
            grid=(B, n_g),
            in_specs=[
                pl.BlockSpec((1, C, P), lambda b, c: (b, 0, 0)),
                pl.BlockSpec((1, C, P), lambda b, c: (b, 0, 0)),
                pl.BlockSpec((C, C), lambda b, c: (0, 0)),
                pl.BlockSpec((C, 1), lambda b, c: (0, 0)),
                pl.BlockSpec((C, C), lambda b, c: (0, 0)),
                pl.BlockSpec((C, 1), lambda b, c: (0, 0)),
                pl.BlockSpec((P, H0 * W0), lambda b, c: (0, 0)),
                pl.BlockSpec(memory_space=pl.ANY),   # slab: aliased, never read
            ],
            out_specs=pl.BlockSpec((1, group, H0 * W0),
                                   lambda b, c: (b, cb + c, 0)),
            scratch_shapes=[pltpu.VMEM((C, H0 * W0), jnp.float32)],
        ),
        compiler_params=pltpu.CompilerParams(
            dimension_semantics=("parallel", "arbitrary"),
            vmem_limit_bytes=48 * 1024 * 1024,  # fits v7x (64 MiB) and v5e/v6e
        ),
        cost_estimate=cost,
        input_output_aliases={7: 0},            # slab (input 7) -> output 0
    )(x, d, wr, br2, wd, bd2, K, slab)


# --------------------------------------------------------------------------
# MSDAM forward
# --------------------------------------------------------------------------
def init_params(channels_list, key):
    params = []
    for c in channels_list:
        key, k1, k2, k3, k4 = jax.random.split(key, 5)
        s = 1.0 / np.sqrt(c)
        wr = jax.random.uniform(k1, (c, c), jnp.float32, -s, s)   # 1x1 conv (O, I)
        br = jax.random.uniform(k2, (c,), jnp.float32, -s, s)
        wd = jax.random.uniform(k3, (c, c), jnp.float32, -s, s)
        bd = jax.random.uniform(k4, (c,), jnp.float32, -s, s)
        params.append((wr, br, wd, bd))
    return params


def msdam_forward(rgb_feature, depth_feature, params):
    assert isinstance(rgb_feature, list) and isinstance(depth_feature, list)
    n = len(rgb_feature)
    assert len(depth_feature) == n == len(params)
    B = rgb_feature[0].shape[0]
    H0, W0 = rgb_feature[0].shape[2], rgb_feature[0].shape[3]
    channels = [int(r.shape[1]) for r in rgb_feature]
    Ctot = sum(channels)

    group = channels[0]
    for c in channels[1:]:
        group = math.gcd(group, c)

    if group % 8 == 0 or n == 1:
        # Every level writes its channel range of one shared output slab in
        # place (no torch.cat-style extra HBM pass).
        slab = jnp.zeros((B, Ctot, H0 * W0), jnp.float32)
        base = 0
        for (rgb, dep), p, C in zip(zip(rgb_feature, depth_feature), params, channels):
            slab = msdam_level(rgb, dep, *p, slab, base, group, H0, W0)
            base += C
        return slab.reshape(B, Ctot, H0, W0)

    # Fallback when the channel gcd is not sublane-aligned (rare): per-level
    # slabs + one concat.  TODO(synk): pad channel groups to 8 instead.
    outs = []
    for (rgb, dep), p, C in zip(zip(rgb_feature, depth_feature), params, channels):
        lvl = jnp.zeros((B, C, H0 * W0), jnp.float32)
        outs.append(msdam_level(rgb, dep, *p, lvl, 0, C, H0, W0))
    return jnp.concatenate(outs, axis=1).reshape(B, Ctot, H0, W0)


# --------------------------------------------------------------------------
# numpy float64 reference (same math) for a tight correctness check
# --------------------------------------------------------------------------
def msdam_reference(rgb_feature, depth_feature, params):
    H0, W0 = rgb_feature[0].shape[2], rgb_feature[0].shape[3]
    outs = []
    for (rgb, dep), (wr, br, wd, bd) in zip(zip(rgb_feature, depth_feature), params):
        r = np.asarray(rgb, np.float64)
        dd = np.asarray(dep, np.float64)
        Wr = np.asarray(wr, np.float64)
        Br = np.asarray(br, np.float64)
        Wd = np.asarray(wd, np.float64)
        Bd = np.asarray(bd, np.float64)
        cr = np.einsum("oi,bihw->bohw", Wr, r) + Br[None, :, None, None]
        cd = np.einsum("oi,bihw->bohw", Wd, dd) + Bd[None, :, None, None]
        fused = cr * (1.0 / (1.0 + np.exp(-cd))) + r
        H, W = r.shape[2], r.shape[3]
        ay = bilinear_matrix(H0, H)
        ax = bilinear_matrix(W0, W)
        outs.append(np.einsum("gh,bchw,vw->bcgv", ay, fused, ax))
    return np.concatenate(outs, axis=1)


# --------------------------------------------------------------------------
if __name__ == "__main__":
    key = jax.random.PRNGKey(0)
    channels_list = [8, 16]        # gcd = 8 -> sublane-aligned channel groups
    spatial = [(16, 16), (8, 8)]   # level 0 defines the target size
    B = 2

    k_rgb, k_dep, k_par = jax.random.split(key, 3)
    rgb_feature, depth_feature = [], []
    for i, (c, (h, w)) in enumerate(zip(channels_list, spatial)):
        rgb_feature.append(jax.random.normal(jax.random.fold_in(k_rgb, i),
                                             (B, c, h, w), jnp.float32))
        depth_feature.append(jax.random.normal(jax.random.fold_in(k_dep, i),
                                               (B, c, h, w), jnp.float32))
    params = init_params(channels_list, k_par)

    out = msdam_forward(rgb_feature, depth_feature, params)
    out = jax.block_until_ready(out)

    assert out.shape == (B, sum(channels_list), 16, 16), out.shape
    assert out.dtype == jnp.float32

    ref = msdam_reference(rgb_feature, depth_feature, params)
    # all-f32 kernel vs float64 reference -> tight tolerance
    np.testing.assert_allclose(np.asarray(out, np.float64), ref,
                               rtol=1e-4, atol=1e-4)

    print("KERNEL_OK")
</pallas_src>

<mosaic_0001>
module attributes {stable_mosaic.version = 11 : i64} {
  func.func @_level_kernel(%arg0: i32, %arg1: i32, %arg2: memref<1x8x256xf32, #tpu.memory_space<vmem>>, %arg3: memref<1x8x256xf32, #tpu.memory_space<vmem>>, %arg4: memref<8x8xf32, #tpu.memory_space<vmem>>, %arg5: memref<8x1xf32, #tpu.memory_space<vmem>>, %arg6: memref<8x8xf32, #tpu.memory_space<vmem>>, %arg7: memref<8x1xf32, #tpu.memory_space<vmem>>, %arg8: memref<256x256xf32, #tpu.memory_space<vmem>>, %arg9: memref<2x24x256xf32, #tpu.memory_space<any>>, %arg10: memref<1x8x256xf32, #tpu.memory_space<vmem>>, %arg11: memref<8x256xf32, #tpu.memory_space<vmem>>) attributes {dimension_semantics = [#tpu.dimension_semantics<parallel>, #tpu.dimension_semantics<arbitrary>], iteration_bounds = array<i64: 2, 1>, scalar_prefetch = 0 : i64, scratch_operands = 1 : i64, tpu.core_type = #tpu.core_type<tc>, window_params = [{transform_indices = @transform_0, window_bounds = array<i64: 1, 8, 256>}, {transform_indices = @transform_1, window_bounds = array<i64: 1, 8, 256>}, {pipeline_mode = #tpu.pipeline_mode<synchronous>, transform_indices = @transform_2, window_bounds = array<i64: 8, 8>}, {pipeline_mode = #tpu.pipeline_mode<synchronous>, transform_indices = @transform_3, window_bounds = array<i64: 8, 1>}, {pipeline_mode = #tpu.pipeline_mode<synchronous>, transform_indices = @transform_4, window_bounds = array<i64: 8, 8>}, {pipeline_mode = #tpu.pipeline_mode<synchronous>, transform_indices = @transform_5, window_bounds = array<i64: 8, 1>}, {pipeline_mode = #tpu.pipeline_mode<synchronous>, transform_indices = @transform_6, window_bounds = array<i64: 256, 256>}, {}, {transform_indices = @transform_8, window_bounds = array<i64: 1, 8, 256>}]} {
    %c0_i32 = arith.constant 0 : i32
    %0 = arith.cmpi eq, %arg1, %c0_i32 : i32
    %1 = arith.extui %0 : i1 to i32
    %c0_i32_0 = arith.constant 0 : i32
    %2 = arith.cmpi ne, %1, %c0_i32_0 : i32
    scf.if %2 {
      %c0_4 = arith.constant 0 : index
      %c0_5 = arith.constant 0 : index
      %c0_6 = arith.constant 0 : index
      %10 = vector.load %arg2[%c0_4, %c0_5, %c0_6] : memref<1x8x256xf32, #tpu.memory_space<vmem>>, vector<1x8x256xf32>
      %11 = vector.shape_cast %10 : vector<1x8x256xf32> to vector<8x256xf32>
      %c0_7 = arith.constant 0 : index
      %c0_8 = arith.constant 0 : index
      %c0_9 = arith.constant 0 : index
      %12 = vector.load %arg3[%c0_7, %c0_8, %c0_9] : memref<1x8x256xf32, #tpu.memory_space<vmem>>, vector<1x8x256xf32>
      %13 = vector.shape_cast %12 : vector<1x8x256xf32> to vector<8x256xf32>
      %c0_10 = arith.constant 0 : index
      %c0_11 = arith.constant 0 : index
      %14 = vector.load %arg4[%c0_10, %c0_11] : memref<8x8xf32, #tpu.memory_space<vmem>>, vector<8x8xf32>
      %cst = arith.constant dense<0.000000e+00> : vector<8x256xf32>
      %15 = tpu.matmul %14, %11, %cst {dimension_numbers = #tpu.dot_dimension_numbers<[1], [0], [0], [1], [0, 0, 1, 1], [], []>} : vector<8x8xf32>, vector<8x256xf32>, vector<8x256xf32> -> vector<8x256xf32>
      %c0_12 = arith.constant 0 : index
      %c0_13 = arith.constant 0 : index
      %16 = vector.load %arg5[%c0_12, %c0_13] : memref<8x1xf32, #tpu.memory_space<vmem>>, vector<8x1xf32>
      %17 = vector.broadcast %16 : vector<8x1xf32> to vector<8x256xf32>
      %18 = arith.addf %15, %17 : vector<8x256xf32>
      %c0_14 = arith.constant 0 : index
      %c0_15 = arith.constant 0 : index
      %19 = vector.load %arg6[%c0_14, %c0_15] : memref<8x8xf32, #tpu.memory_space<vmem>>, vector<8x8xf32>
      %cst_16 = arith.constant dense<0.000000e+00> : vector<8x256xf32>
      %20 = tpu.matmul %19, %13, %cst_16 {dimension_numbers = #tpu.dot_dimension_numbers<[1], [0], [0], [1], [0, 0, 1, 1], [], []>} : vector<8x8xf32>, vector<8x256xf32>, vector<8x256xf32> -> vector<8x256xf32>
      %c0_17 = arith.constant 0 : index
      %c0_18 = arith.constant 0 : index
      %21 = vector.load %arg7[%c0_17, %c0_18] : memref<8x1xf32, #tpu.memory_space<vmem>>, vector<8x1xf32>
      %22 = vector.broadcast %21 : vector<8x1xf32> to vector<8x256xf32>
      %23 = arith.addf %20, %22 : vector<8x256xf32>
      %cst_19 = arith.constant 0.000000e+00 : f32
      %24 = vector.broadcast %cst_19 : f32 to vector<8x256xf32>
      %25 = arith.subf %24, %23 : vector<8x256xf32>
      %26 = math.exp %25 : vector<8x256xf32>
      %cst_20 = arith.constant 1.000000e+00 : f32
      %27 = vector.broadcast %cst_20 : f32 to vector<8x256xf32>
      %28 = arith.addf %27, %26 : vector<8x256xf32>
      %cst_21 = arith.constant 1.000000e+00 : f32
      %29 = vector.broadcast %cst_21 : f32 to vector<8x256xf32>
      %30 = arith.divf %29, %28 : vector<8x256xf32>
      %31 = arith.mulf %18, %30 : vector<8x256xf32>
      %32 = arith.addf %31, %11 : vector<8x256xf32>
      %c0_22 = arith.constant 0 : index
      %c0_23 = arith.constant 0 : index
      %33 = vector.load %arg8[%c0_22, %c0_23] : memref<256x256xf32, #tpu.memory_space<vmem>>, vector<256x256xf32>
      %cst_24 = arith.constant dense<0.000000e+00> : vector<8x256xf32>
      %34 = tpu.matmul %32, %33, %cst_24 {dimension_numbers = #tpu.dot_dimension_numbers<[1], [0], [0], [1], [0, 0, 1, 1], [], []>} : vector<8x256xf32>, vector<256x256xf32>, vector<8x256xf32> -> vector<8x256xf32>
      %c0_25 = arith.constant 0 : index
      %c0_26 = arith.constant 0 : index
      %35 = vector.load %arg11[%c0_25, %c0_26] : memref<8x256xf32, #tpu.memory_space<vmem>>, vector<8x256xf32>
      tpu.vector_store %arg11[%c0_25, %c0_26], %34 {strides = array<i32>} : memref<8x256xf32, #tpu.memory_space<vmem>>, vector<8x256xf32>,
    } else {
    }
    %c8_i32 = arith.constant 8 : i32
    %3 = arith.muli %arg1, %c8_i32 : i32
    %4 = tpu.assume_multiple %3, 8 : i32
    %5 = arith.index_cast %4 : i32 to index
    %c0 = arith.constant 0 : index
    %6 = vector.load %arg11[%5, %c0] : memref<8x256xf32, #tpu.memory_space<vmem>>, vector<8x256xf32>
    %c0_1 = arith.constant 0 : index
    %c0_2 = arith.constant 0 : index
    %c0_3 = arith.constant 0 : index
    %7 = vector.load %arg10[%c0_1, %c0_2, %c0_3] : memref<1x8x256xf32, #tpu.memory_space<vmem>>, vector<1x8x256xf32>
    %8 = vector.shape_cast %7 : vector<1x8x256xf32> to vector<8x256xf32>
    %9 = vector.shape_cast %6 : vector<8x256xf32> to vector<1x8x256xf32>
    tpu.vector_store %arg10[%c0_1, %c0_2, %c0_3], %9 {strides = array<i32>} : memref<1x8x256xf32, #tpu.memory_space<vmem>>, vector<1x8x256xf32>,
    return
  }
  func.func @transform_0(%arg0: i32, %arg1: i32) -> (i32, i32, i32) {
    %c0_i32 = arith.constant 0 : i32
    %c0_i32_0 = arith.constant 0 : i32
    %c0_i32_1 = arith.constant 0 : i32
    return %arg0, %c0_i32, %c0_i32_0 : i32, i32, i32
  }
  func.func @transform_1(%arg0: i32, %arg1: i32) -> (i32, i32, i32) {
    %c0_i32 = arith.constant 0 : i32
    %c0_i32_0 = arith.constant 0 : i32
    %c0_i32_1 = arith.constant 0 : i32
    return %arg0, %c0_i32, %c0_i32_0 : i32, i32, i32
  }
  func.func @transform_2(%arg0: i32, %arg1: i32) -> (i32, i32) {
    %c0_i32 = arith.constant 0 : i32
    %c0_i32_0 = arith.constant 0 : i32
    %c0_i32_1 = arith.constant 0 : i32
    return %c0_i32, %c0_i32_0 : i32, i32
  }
  func.func @transform_3(%arg0: i32, %arg1: i32) -> (i32, i32) {
    %c0_i32 = arith.constant 0 : i32
    %c0_i32_0 = arith.constant 0 : i32
    %c0_i32_1 = arith.constant 0 : i32
    return %c0_i32, %c0_i32_0 : i32, i32
  }
  func.func @transform_4(%arg0: i32, %arg1: i32) -> (i32, i32) {
    %c0_i32 = arith.constant 0 : i32
    %c0_i32_0 = arith.constant 0 : i32
    %c0_i32_1 = arith.constant 0 : i32
    return %c0_i32, %c0_i32_0 : i32, i32
  }
  func.func @transform_5(%arg0: i32, %arg1: i32) -> (i32, i32) {
    %c0_i32 = arith.constant 0 : i32
    %c0_i32_0 = arith.constant 0 : i32
    %c0_i32_1 = arith.constant 0 : i32
    return %c0_i32, %c0_i32_0 : i32, i32
  }
  func.func @transform_6(%arg0: i32, %arg1: i32) -> (i32, i32) {
    %c0_i32 = arith.constant 0 : i32
    %c0_i32_0 = arith.constant 0 : i32
    %c0_i32_1 = arith.constant 0 : i32
    return %c0_i32, %c0_i32_0 : i32, i32
  }
  func.func @transform_8(%arg0: i32, %arg1: i32) -> (i32, i32, i32) {
    %c0_i32 = arith.constant 0 : i32
    %0 = arith.addi %c0_i32, %arg1 : i32
    %c0_i32_0 = arith.constant 0 : i32
    %c0_i32_1 = arith.constant 0 : i32
    return %arg0, %0, %c0_i32_0 : i32, i32, i32
  }
}

</mosaic_0001>

<llo_original>
// kernel: tpu_custom_call.1
$region0: #{tpu_custom_call.1}
  #allocation0 [shape = 'u32[]', space=smem, size = 0x4, offset = 0x4, fixed_abs, tag = 'smem constant byte address 0x4 - core index']
  #allocation1 [shape = 'u32[144,128]{1,0:T(1,128)}', space=vmem, size = 0x12000, scoped, tag = 'internal scratch']
  #allocation2 [shape = 'f32[8,256]{1,0:T(8,128)}', space=vmem, size = 0x2000, scoped, tag = 'scratch operand']
  %s0 = inlined_call_operand.vmem [shape: f32[2,8,256], index: 0, kind: input, shape index: {}]
  %s1 = inlined_call_operand.vmem [shape: f32[2,8,256], index: 1, kind: input, shape index: {}]
  %s2 = inlined_call_operand.vmem [shape: f32[8,8], index: 2, kind: input, shape index: {}]
  %s3 = inlined_call_operand.vmem [shape: f32[8,1], index: 3, kind: input, shape index: {}]
  %s4 = inlined_call_operand.vmem [shape: f32[8,8], index: 4, kind: input, shape index: {}]
  %s5 = inlined_call_operand.vmem [shape: f32[8,1], index: 5, kind: input, shape index: {}]
  %s6 = inlined_call_operand.hbm [shape: f32[256,256], index: 6, kind: input, shape index: {}]
  %s7 = inlined_call_operand.hbm [shape: f32[2,24,256], index: 7, kind: input, shape index: {}, may-alias: {7,8}]
  %s8 = inlined_call_operand.hbm [shape: f32[2,24,256], index: 8, kind: output, shape index: {}, may-alias: {7,8}]
  %s9 = sld [smem:[#allocation0]]
  $region69: #{tpu_custom_call.1} parent=0
    _
  %s11 = ssub.s32 1, %s9
  %s12 = scalar_select 0, %s11, %s9
  $region1: #{tpu_custom_call.1} parent=0
    #allocation3 [shape = 'u8[262144]{0}', space=vmem, size = 0x40000, scoped, tag = 'input window, operand 6, single buffered']
    #allocation4 [shape = 's32[2]{0}', space=sflag, size = 0x8, scoped, tag = 'scoped memory for tpu_custom_call.1']
    #allocation5 [shape = 's32[2]{0}', space=sflag, size = 0x8, scoped, tag = 'scoped memory for tpu_custom_call.1']
    #allocation6 [shape = 'u8[16384]{0}', space=vmem, size = 0x4000, scoped, tag = 'output window, operand 0']
    %13 = vsyncpa [#allocation4], 0
    %14 = vsyncpa [#allocation5], 0
    %s15 = scalar_lea.sflag [#allocation5], 1
    %16 = vsyncpa %s15, 0
    loop: start=0, step=1, limit=4
    $region2: #{tpu_custom_call.1} parent=1 // loop_pre_header
      _
    $region3: #{tpu_custom_call.1} parent=1 // loop_header
      %s18 = sphi 0, %s22
      %p19 = scmp.ge.s32.totalorder %s18, 4
      %s25 = sphi 0, %s37
      %s26 = sphi 0, %s33
      %s27 = sphi 0, %s25
      %s28 = sphi 0, %s26
      %s29 = sphi 0, %s27
      %s30 = sphi 0, %s28
      %s40 = sphi 0, %s42
      %s43 = sphi 0, %s40
      %s44 = sphi 0, %s43
      %s60 = sphi 0, %s44
      %s66 = sphi 0, %s68
      %s69 = sphi 0, %s66
      %s70 = sphi 0, %s69
      %s86 = sphi 0, %s70
      %s90 = sphi 0, %s90
      %s92 = sphi 0, %s90
      %s93 = sphi 0, %s92
      %s107 = sphi 0, %s93
      %s111 = sphi 0, %s111
      %s113 = sphi 0, %s111
      %s114 = sphi 0, %s113
      %s128 = sphi 0, %s114
      %s132 = sphi 0, %s132
      %s134 = sphi 0, %s132
      %s135 = sphi 0, %s134
      %s149 = sphi 0, %s135
      %s153 = sphi 0, %s153
      %s155 = sphi 0, %s153
      %s156 = sphi 0, %s155
      %s170 = sphi 0, %s156
      %s174 = sphi 0, %s174
      %s176 = sphi 0, %s174
      %s177 = sphi 0, %s176
      %s191 = sphi 0, %s177
      %s199 = sphi 0, %s201
      %s202 = sphi 0, %s199
      %s203 = sphi 0, %s202
      %s219 = sphi 0, %s203
    $region4: #{tpu_custom_call.1} parent=1 // loop_header_branch
      %21 = sbr.rel (%p19) target = $region8
    $region5: #{tpu_custom_call.1} parent=1 // loop_body
      %s23 = ssub.s32 %s18, 1
      %s24 = ssub.s32 %s18, 2
      %s31 = sadd.s32 1, %s26
      %p32 = scmp.ge.s32.totalorder %s31, 1
      %s33 = scalar_select %p32, 0, %s31
      %s34 = sadd.s32 1, %s25
      %s35 = scalar_select %p32, %s34, %s25
      %p36 = scmp.ge.s32.totalorder %s35, 2
      %s37 = scalar_select %p36, 0, %s35
      %s38 = ssub.s32 %s25, %s37
      %p39 = scmp.eq.s32.totalorder %s38, 0
      %s41 = sadd.s32 %s40, 1
      %s42 = scalar_select %p39, %s40, %s41
      %p45 = pneg %p39
      %p46 = scmp.eq.s32.totalorder %s18, 1
      %p47 = por %p45, %p46
      %p48 = scmp.ne.s32.totalorder %s40, %s43
      %p49 = scmp.eq.s32.totalorder %s18, 0
      %p50 = por %p48, %p49
      %p51 = scmp.ne.s32.totalorder %s40, %s43
      %p52 = scmp.eq.s32.totalorder %s23, 1
      %p53 = por %p51, %p52
      %p54 = scmp.ne.s32.totalorder %s43, %s44
      %p55 = scmp.eq.s32.totalorder %s23, 0
      %p56 = por %p54, %p55
      %p57 = scmp.ne.s32.totalorder %s43, %s44
      %p58 = scmp.eq.s32.totalorder %s24, 1
      %p59 = por %p57, %p58
      %p61 = scmp.ne.s32.totalorder %s44, %s60
      %p62 = scmp.eq.s32.totalorder %s24, 0
      %p63 = por %p61, %p62
      %s64 = ssub.s32 %s25, %s37
      %p65 = scmp.eq.s32.totalorder %s64, 0
      %s67 = sadd.s32 %s66, 1
      %s68 = scalar_select %p65, %s66, %s67
      %p71 = pneg %p65
      %p72 = scmp.eq.s32.totalorder %s18, 1
      %p73 = por %p71, %p72
      %p74 = scmp.ne.s32.totalorder %s66, %s69
      %p75 = scmp.eq.s32.totalorder %s18, 0
      %p76 = por %p74, %p75
      %p77 = scmp.ne.s32.totalorder %s66, %s69
      %p78 = scmp.eq.s32.totalorder %s23, 1
      %p79 = por %p77, %p78
      %p80 = scmp.ne.s32.totalorder %s69, %s70
      %p81 = scmp.eq.s32.totalorder %s23, 0
      %p82 = por %p80, %p81
      %p83 = scmp.ne.s32.totalorder %s69, %s70
      %p84 = scmp.eq.s32.totalorder %s24, 1
      %p85 = por %p83, %p84
      %p87 = scmp.ne.s32.totalorder %s70, %s86
      %p88 = scmp.eq.s32.totalorder %s24, 0
      %p89 = por %p87, %p88
      %s91 = sadd.s32 %s90, 1
      %p94 = scmp.eq.s32.totalorder %s18, 1
      %p95 = scmp.ne.s32.totalorder %s90, %s92
      %p96 = scmp.eq.s32.totalorder %s18, 0
      %p97 = por %p95, %p96
      %p98 = scmp.ne.s32.totalorder %s90, %s92
      %p99 = scmp.eq.s32.totalorder %s23, 1
      %p100 = por %p98, %p99
      %p101 = scmp.ne.s32.totalorder %s92, %s93
      %p102 = scmp.eq.s32.totalorder %s23, 0
      %p103 = por %p101, %p102
      %p104 = scmp.ne.s32.totalorder %s92, %s93
      %p105 = scmp.eq.s32.totalorder %s24, 1
      %p106 = por %p104, %p105
      %p108 = scmp.ne.s32.totalorder %s93, %s107
      %p109 = scmp.eq.s32.totalorder %s24, 0
      %p110 = por %p108, %p109
      %s112 = sadd.s32 %s111, 1
      %p115 = scmp.eq.s32.totalorder %s18, 1
      %p116 = scmp.ne.s32.totalorder %s111, %s113
      %p117 = scmp.eq.s32.totalorder %s18, 0
      %p118 = por %p116, %p117
      %p119 = scmp.ne.s32.totalorder %s111, %s113
      %p120 = scmp.eq.s32.totalorder %s23, 1
      %p121 = por %p119, %p120
      %p122 = scmp.ne.s32.totalorder %s113, %s114
      %p123 = scmp.eq.s32.totalorder %s23, 0
      %p124 = por %p122, %p123
      %p125 = scmp.ne.s32.totalorder %s113, %s114
      %p126 = scmp.eq.s32.totalorder %s24, 1
      %p127 = por %p125, %p126
      %p129 = scmp.ne.s32.totalorder %s114, %s128
      %p130 = scmp.eq.s32.totalorder %s24, 0
      %p131 = por %p129, %p130
      %s133 = sadd.s32 %s132, 1
      %p136 = scmp.eq.s32.totalorder %s18, 1
      %p137 = scmp.ne.s32.totalorder %s132, %s134
      %p138 = scmp.eq.s32.totalorder %s18, 0
      %p139 = por %p137, %p138
      %p140 = scmp.ne.s32.totalorder %s132, %s134
      %p141 = scmp.eq.s32.totalorder %s23, 1
      %p142 = por %p140, %p141
      %p143 = scmp.ne.s32.totalorder %s134, %s135
      %p144 = scmp.eq.s32.totalorder %s23, 0
      %p145 = por %p143, %p144
      %p146 = scmp.ne.s32.totalorder %s134, %s135
      %p147 = scmp.eq.s32.totalorder %s24, 1
      %p148 = por %p146, %p147
      %p150 = scmp.ne.s32.totalorder %s135, %s149
      %p151 = scmp.eq.s32.totalorder %s24, 0
      %p152 = por %p150, %p151
      %s154 = sadd.s32 %s153, 1
      %p157 = scmp.eq.s32.totalorder %s18, 1
      %p158 = scmp.ne.s32.totalorder %s153, %s155
      %p159 = scmp.eq.s32.totalorder %s18, 0
      %p160 = por %p158, %p159
      %p161 = scmp.ne.s32.totalorder %s153, %s155
      %p162 = scmp.eq.s32.totalorder %s23, 1
      %p163 = por %p161, %p162
      %p164 = scmp.ne.s32.totalorder %s155, %s156
      %p165 = scmp.eq.s32.totalorder %s23, 0
      %p166 = por %p164, %p165
      %p167 = scmp.ne.s32.totalorder %s155, %s156
      %p168 = scmp.eq.s32.totalorder %s24, 1
      %p169 = por %p167, %p168
      %p171 = scmp.ne.s32.totalorder %s156, %s170
      %p172 = scmp.eq.s32.totalorder %s24, 0
      %p173 = por %p171, %p172
      %s175 = sadd.s32 %s174, 1
      %p178 = scmp.eq.s32.totalorder %s18, 1
      %p179 = scmp.ne.s32.totalorder %s174, %s176
      %p180 = scmp.eq.s32.totalorder %s18, 0
      %p181 = por %p179, %p180
      %p182 = scmp.ne.s32.totalorder %s174, %s176
      %p183 = scmp.eq.s32.totalorder %s23, 1
      %p184 = por %p182, %p183
      %p185 = scmp.ne.s32.totalorder %s176, %s177
      %p186 = scmp.eq.s32.totalorder %s23, 0
      %p187 = por %p185, %p186
      %p188 = scmp.ne.s32.totalorder %s176, %s177
      %p189 = scmp.eq.s32.totalorder %s24, 1
      %p190 = por %p188, %p189
      %p192 = scmp.ne.s32.totalorder %s177, %s191
      %p193 = scmp.eq.s32.totalorder %s24, 0
      %p194 = por %p192, %p193
      %s195 = ssub.s32 %s25, %s37
      %s196 = ssub.s32 %s26, %s33
      %s197 = sor.u32 %s195, %s196
      %p198 = scmp.eq.s32.totalorder %s197, 0
      %s200 = sadd.s32 %s199, 1
      %s201 = scalar_select %p198, %s199, %s200
      %p204 = pneg %p198
      %p205 = scmp.eq.s32.totalorder %s18, 1
      %p206 = por %p204, %p205
      %p207 = scmp.ne.s32.totalorder %s199, %s202
      %p208 = scmp.eq.s32.totalorder %s18, 0
      %p209 = por %p207, %p208
      %p210 = scmp.ne.s32.totalorder %s199, %s202
      %p211 = scmp.eq.s32.totalorder %s23, 1
      %p212 = por %p210, %p211
      %p213 = scmp.ne.s32.totalorder %s202, %s203
      %p214 = scmp.eq.s32.totalorder %s23, 0
      %p215 = por %p213, %p214
      %p216 = scmp.ne.s32.totalorder %s202, %s203
      %p217 = scmp.eq.s32.totalorder %s24, 1
      %p218 = por %p216, %p217
      %p220 = scmp.ne.s32.totalorder %s203, %s219
      %p221 = scmp.eq.s32.totalorder %s24, 0
      %p222 = por %p220, %p221
      %p223 = scmp.le.s32.totalorder 1, %s18
      %p224 = scmp.lt.s32.totalorder %s18, 3
      %p225 = pnand %p223, %p224
      %p226 = pneg %p225
      // Predicated region
      $region9: #{tpu_custom_call.1} parent=5 // pred_check
        _
      $region10: #{tpu_custom_call.1} parent=5 // pred_check_branch
        %228 = sbr.rel (%p225) target = $region12
      $region11: #{tpu_custom_call.1} parent=5 // pred_region
        %s229 = ssub.s32 %s18, 1
        // Predicated region
        $region13: #{tpu_custom_call.1} parent=11 // pred_check
          %p230 = pneg %p103
        $region14: #{tpu_custom_call.1} parent=11 // pred_check_branch
          %232 = sbr.rel (%p230) target = $region16
        $region15: #{tpu_custom_call.1} parent=11 // pred_region
          _
        $region16: #{tpu_custom_call.1} parent=11 // pred_fallthru
          _
        // Predicated region
        $region17: #{tpu_custom_call.1} parent=11 // pred_check
          %p233 = pneg %p124
        $region18: #{tpu_custom_call.1} parent=11 // pred_check_branch
          %235 = sbr.rel (%p233) target = $region20
        $region19: #{tpu_custom_call.1} parent=11 // pred_region
          _
        $region20: #{tpu_custom_call.1} parent=11 // pred_fallthru
          _
        // Predicated region
        $region21: #{tpu_custom_call.1} parent=11 // pred_check
          %p236 = pneg %p145
        $region22: #{tpu_custom_call.1} parent=11 // pred_check_branch
          %238 = sbr.rel (%p236) target = $region24
        $region23: #{tpu_custom_call.1} parent=11 // pred_region
          _
        $region24: #{tpu_custom_call.1} parent=11 // pred_fallthru
          _
        // Predicated region
        $region25: #{tpu_custom_call.1} parent=11 // pred_check
          %p239 = pneg %p166
        $region26: #{tpu_custom_call.1} parent=11 // pred_check_branch
          %241 = sbr.rel (%p239) target = $region28
        $region27: #{tpu_custom_call.1} parent=11 // pred_region
          _
        $region28: #{tpu_custom_call.1} parent=11 // pred_fallthru
          _
        // Predicated region
        $region29: #{tpu_custom_call.1} parent=11 // pred_check
          %p242 = pneg %p187
        $region30: #{tpu_custom_call.1} parent=11 // pred_check_branch
          %244 = sbr.rel (%p242) target = $region32
        $region31: #{tpu_custom_call.1} parent=11 // pred_region
          %s246 = ssub.s32 8192, 8192
          %247 = vsyncadd [#allocation4], %s246
          %s248 = sshll.u32 [#allocation3], 4
          %s249 = int_to_ptr.vmem [resolvable:$true] %s248
          %254 = dma.hbm_to_vmem [thread:$0]  %s6, 8192, %s249, [#allocation4], 256, 256, 16
        $region32: #{tpu_custom_call.1} parent=11 // pred_fallthru
          _
      $region12: #{tpu_custom_call.1} parent=5 // pred_fallthru
        _
      %p255 = scmp.lt.s32.totalorder %s18, 2
      // Predicated region
      $region33: #{tpu_custom_call.1} parent=5 // pred_check
        %p256 = pneg %p255
      $region34: #{tpu_custom_call.1} parent=5 // pred_check_branch
        %258 = sbr.rel (%p256) target = $region36
      $region35: #{tpu_custom_call.1} parent=5 // pred_region
        // Predicated region
        $region37: #{tpu_custom_call.1} parent=35 // pred_check
          %p259 = pneg %p50
        $region38: #{tpu_custom_call.1} parent=35 // pred_check_branch
          %261 = sbr.rel (%p259) target = $region40
        $region39: #{tpu_custom_call.1} parent=35 // pred_region
          %p262 = scmp.lt.s32.totalorder %s25, 1
          %s263 = scalar_select %p262, %s25, 1
          %s264 = smul.addr %s263, 2
          %s265 = smul.addr %s264, 8
          %s266 = scalar_lea.vmem %s0, %s265
        $region40: #{tpu_custom_call.1} parent=35 // pred_fallthru
          _
        // Predicated region
        $region41: #{tpu_custom_call.1} parent=35 // pred_check
          %p267 = pneg %p76
        $region42: #{tpu_custom_call.1} parent=35 // pred_check_branch
          %269 = sbr.rel (%p267) target = $region44
        $region43: #{tpu_custom_call.1} parent=35 // pred_region
          %p270 = scmp.lt.s32.totalorder %s25, 1
          %s271 = scalar_select %p270, %s25, 1
          %s272 = smul.addr %s271, 2
          %s273 = smul.addr %s272, 8
          %s274 = scalar_lea.vmem %s1, %s273
        $region44: #{tpu_custom_call.1} parent=35 // pred_fallthru
          _
      $region36: #{tpu_custom_call.1} parent=5 // pred_fallthru
        _
      %p275 = scmp.le.s32.totalorder 1, %s18
      %p276 = scmp.lt.s32.totalorder %s18, 3
      %p277 = pnand %p275, %p276
      %p278 = pneg %p277
      // Predicated region
      $region45: #{tpu_custom_call.1} parent=5 // pred_check
        _
      $region46: #{tpu_custom_call.1} parent=5 // pred_check_branch
        %280 = sbr.rel (%p277) target = $region48
      $region47: #{tpu_custom_call.1} parent=5 // pred_region
        %s281 = ssub.s32 %s18, 1
        // Predicated region
        $region49: #{tpu_custom_call.1} parent=47 // pred_check
          %p282 = pneg %p187
        $region50: #{tpu_custom_call.1} parent=47 // pred_check_branch
          %284 = sbr.rel (%p282) target = $region52
        $region51: #{tpu_custom_call.1} parent=47 // pred_region
          %285 = dma.done [#allocation4], 8192
        $region52: #{tpu_custom_call.1} parent=47 // pred_fallthru
          _
        %p286 = scmp.lt.s32.totalorder %s27, 1
        %s287 = scalar_select %p286, %s27, 1
        %s288 = smul.addr %s287, 2
        %s289 = smul.addr %s288, 8
        %s290 = scalar_lea.vmem %s0, %s289
        %p291 = pneg %p56
        %p292 = pneg %p53
        %p293 = scmp.lt.s32.totalorder %s27, 1
        %s294 = scalar_select %p293, %s27, 1
        %s295 = smul.addr %s294, 2
        %s296 = smul.addr %s295, 8
        %s297 = scalar_lea.vmem %s1, %s296
        %p298 = pneg %p82
        %p299 = pneg %p79
        %p300 = pneg %p103
        %p301 = pneg %p100
        %p302 = pneg %p124
        %p303 = pneg %p121
        %p304 = pneg %p145
        %p305 = pneg %p142
        %p306 = pneg %p166
        %p307 = pneg %p163
        %p308 = pneg %p187
        %p309 = pneg %p184
        %p310 = pneg %p215
        %p311 = pneg %p212
        %s312 = sand.u32 %s202, 1
        %s313 = scalar_lea.sflag [#allocation5], %s312
        %s314 = sand.u32 %s202, 1
        %s315 = smul.addr %s314, 16
        %s316 = scalar_lea.vmem [#allocation6], %s315
        %p317 = scmp.lt.s32.totalorder %s27, 1
        %s318 = scalar_select %p317, %s27, 1
        %s319 = smul.addr %s318, 2
        %s320 = smul.addr %s319, 8
        %s321 = scalar_lea.vmem %s0, %s320
        %p322 = scmp.lt.s32.totalorder %s27, 1
        %s323 = scalar_select %p322, %s27, 1
        %s324 = smul.addr %s323, 2
        %s325 = smul.addr %s324, 8
        %s326 = scalar_lea.vmem %s1, %s325
        %p327 = scmp.eq.s32.totalorder %s28, 0
        // Predicated region
        $region53: #{tpu_custom_call.1} parent=47 // pred_check
          %p328 = pneg %p327
        $region54: #{tpu_custom_call.1} parent=47 // pred_check_branch
          %330 = sbr.rel (%p328) target = $region56
        $region55: #{tpu_custom_call.1} parent=47 // pred_region
          %v331 = vld [vmem:[%s321] sm:$0xff]
          %v332 = vld [vmem:[%s321 + $0x8] sm:$0xff]
          %v333 = vld [vmem:[%s326] sm:$0xff]
          %v334 = vld [vmem:[%s326 + $0x8] sm:$0xff]
          %v335 = vld [vmem:[%s2] sm:$0xff]
          %v336 = vld [vmem:[%s3] sm:$0xff]
          %338 = vset.pattern.permute.xlu0 0
          %339 = vperm.xlu0 %338, %v336
          %v340 = vpop.permute.xlu0 %339
          %vm342 = vcmask 64512
          %v344 = vsel %vm342, %v335, 0
          %346 = vmatprep.subr.mxu0 %v332
          %347 = vmatpush1.msra.mxu0 %v331
          %348 = vmatprep.subr.mxu0 0.0
          %349 = vmatpush1.msra.mxu0 0.0
          %350 = vmatprep.subr.mxu0 0.0
          %351 = vmatpush1.msra.mxu0 0.0
          %352 = vmatprep.subr.mxu0 0.0
          %353 = vmatpush1.msra.mxu0 0.0
          %354 = vmatprep.subr.mxu0 0.0
          %355 = vmatpush1.msra.mxu0 0.0
          %356 = vmatprep.subr.mxu0 0.0
          %357 = vmatpush1.msra.mxu0 0.0
          %358 = vmatprep.subr.mxu0 0.0
          %359 = vmatpush1.msra.mxu0 0.0
          %360 = vmatprep.subr.mxu0 0.0
          %361 = vmatpush1.msra.mxu0 0.0
          %362 = vmatprep.subr.mxu0 0.0
          %363 = vmatpush1.msra.mxu0 0.0
          %364 = vmatprep.subr.mxu0 0.0
          %365 = vmatpush1.msra.mxu0 0.0
          %366 = vmatprep.subr.mxu0 0.0
          %367 = vmatpush1.msra.mxu0 0.0
          %368 = vmatprep.subr.mxu0 0.0
          %369 = vmatpush1.msra.mxu0 0.0
          %370 = vmatprep.subr.mxu0 0.0
          %371 = vmatpush1.msra.mxu0 0.0
          %372 = vmatprep.subr.mxu0 0.0
          %373 = vmatpush1.msra.mxu0 0.0
          %374 = vmatprep.subr.mxu0 0.0
          %375 = vmatpush1.msra.mxu0 0.0
          %376 = vmatprep.subr.mxu0 0.0
          %377 = vmatpush1.msra.mxu0 0.0
          %378 = vmatprep.subr.mxu0 0.0
          %379 = vmatpush1.msra.mxu0 0.0
          %380 = vmatprep.subr.mxu0 0.0
          %381 = vmatpush1.msra.mxu0 0.0
          %382 = vmatprep.subr.mxu0 0.0
          %383 = vmatpush1.msra.mxu0 0.0
          %384 = vmatprep.subr.mxu0 0.0
          %385 = vmatpush1.msra.mxu0 0.0
          %386 = vmatprep.subr.mxu0 0.0
          %387 = vmatpush1.msra.mxu0 0.0
          %388 = vmatprep.subr.mxu0 0.0
          %389 = vmatpush1.msra.mxu0 0.0
          %390 = vmatprep.subr.mxu0 0.0
          %391 = vmatpush1.msra.mxu0 0.0
          %392 = vmatprep.subr.mxu0 0.0
          %393 = vmatpush1.msra.mxu0 0.0
          %394 = vmatprep.subr.mxu0 0.0
          %395 = vmatpush1.msra.mxu0 0.0
          %396 = vmatprep.subr.mxu0 0.0
          %397 = vmatpush1.msra.mxu0 0.0
          %398 = vmatprep.subr.mxu0 0.0
          %399 = vmatpush1.msra.mxu0 0.0
          %400 = vmatprep.subr.mxu0 0.0
          %401 = vmatpush1.msra.mxu0 0.0
          %402 = vmatprep.subr.mxu0 0.0
          %403 = vmatpush1.msra.mxu0 0.0
          %404 = vmatprep.subr.mxu0 0.0
          %405 = vmatpush1.msra.mxu0 0.0
          %406 = vmatprep.subr.mxu0 0.0
          %407 = vmatpush1.msra.mxu0 0.0
          %408 = vmatprep.subr.mxu0 0.0
          %409 = vmatpush1.msra.mxu0 0.0
          %410 = vmatprep.mubr.f32.mxu0 0.0
          %411 = vmatmul.mubr.f32.gmra.mrb[0].mxu0 %v344
          %v412 = vpop.f32.mrb[0].mxu0
          %v413 = vadd.f32 %v340, %v412
          %v414 = vpop.f32.mrb[0].mxu0
          %v415 = vadd.f32 %v340, %v414
          %416 = vdwg.mxu0
          %v417 = vld [vmem:[%s4] sm:$0xff]
          %v418 = vld [vmem:[%s5] sm:$0xff]
          %420 = vset.pattern.permute.xlu0 0
          %421 = vperm.xlu0 %420, %v418
          %v422 = vpop.permute.xlu0 %421
          %v425 = vsel %vm342, %v417, 0
          %427 = vmatprep.subr.mxu0 %v334
          %428 = vmatpush1.msra.mxu0 %v333
          %429 = vmatprep.subr.mxu0 0.0
          %430 = vmatpush1.msra.mxu0 0.0
          %431 = vmatprep.subr.mxu0 0.0
          %432 = vmatpush1.msra.mxu0 0.0
          %433 = vmatprep.subr.mxu0 0.0
          %434 = vmatpush1.msra.mxu0 0.0
          %435 = vmatprep.subr.mxu0 0.0
          %436 = vmatpush1.msra.mxu0 0.0
          %437 = vmatprep.subr.mxu0 0.0
          %438 = vmatpush1.msra.mxu0 0.0
          %439 = vmatprep.subr.mxu0 0.0
          %440 = vmatpush1.msra.mxu0 0.0
          %441 = vmatprep.subr.mxu0 0.0
          %442 = vmatpush1.msra.mxu0 0.0
          %443 = vmatprep.subr.mxu0 0.0
          %444 = vmatpush1.msra.mxu0 0.0
          %445 = vmatprep.subr.mxu0 0.0
          %446 = vmatpush1.msra.mxu0 0.0
          %447 = vmatprep.subr.mxu0 0.0
          %448 = vmatpush1.msra.mxu0 0.0
          %449 = vmatprep.subr.mxu0 0.0
          %450 = vmatpush1.msra.mxu0 0.0
          %451 = vmatprep.subr.mxu0 0.0
          %452 = vmatpush1.msra.mxu0 0.0
          %453 = vmatprep.subr.mxu0 0.0
          %454 = vmatpush1.msra.mxu0 0.0
          %455 = vmatprep.subr.mxu0 0.0
          %456 = vmatpush1.msra.mxu0 0.0
          %457 = vmatprep.subr.mxu0 0.0
          %458 = vmatpush1.msra.mxu0 0.0
          %459 = vmatprep.subr.mxu0 0.0
          %460 = vmatpush1.msra.mxu0 0.0
          %461 = vmatprep.subr.mxu0 0.0
          %462 = vmatpush1.msra.mxu0 0.0
          %463 = vmatprep.subr.mxu0 0.0
          %464 = vmatpush1.msra.mxu0 0.0
          %465 = vmatprep.subr.mxu0 0.0
          %466 = vmatpush1.msra.mxu0 0.0
          %467 = vmatprep.subr.mxu0 0.0
          %468 = vmatpush1.msra.mxu0 0.0
          %469 = vmatprep.subr.mxu0 0.0
          %470 = vmatpush1.msra.mxu0 0.0
          %471 = vmatprep.subr.mxu0 0.0
          %472 = vmatpush1.msra.mxu0 0.0
          %473 = vmatprep.subr.mxu0 0.0
          %474 = vmatpush1.msra.mxu0 0.0
          %475 = vmatprep.subr.mxu0 0.0
          %476 = vmatpush1.msra.mxu0 0.0
          %477 = vmatprep.subr.mxu0 0.0
          %478 = vmatpush1.msra.mxu0 0.0
          %479 = vmatprep.subr.mxu0 0.0
          %480 = vmatpush1.msra.mxu0 0.0
          %481 = vmatprep.subr.mxu0 0.0
          %482 = vmatpush1.msra.mxu0 0.0
          %483 = vmatprep.subr.mxu0 0.0
          %484 = vmatpush1.msra.mxu0 0.0
          %485 = vmatprep.subr.mxu0 0.0
          %486 = vmatpush1.msra.mxu0 0.0
          %487 = vmatprep.subr.mxu0 0.0
          %488 = vmatpush1.msra.mxu0 0.0
          %489 = vmatprep.subr.mxu0 0.0
          %490 = vmatpush1.msra.mxu0 0.0
          %491 = vmatprep.mubr.f32.mxu0 0.0
          %492 = vmatmul.mubr.f32.gmra.mrb[0].mxu0 %v425
          %v493 = vpop.f32.mrb[0].mxu0
          %v494 = vadd.f32 %v422, %v493
          %v495 = vpop.f32.mrb[0].mxu0
          %v496 = vadd.f32 %v422, %v495
          %497 = vdwg.mxu0
          %v498 = vsub.f32 0.0, %v494
          %v499 = vsub.f32 0.0, %v496
          %v500 = vmul.f32 %v498, 1.442695
          %v501 = vpow.pop %v500
          %v502 = vmul.f32 %v499, 1.442695
          %v503 = vpow.pop %v502
          %v504 = vadd.f32 %v501, 1.0
          %v505 = vadd.f32 %v503, 1.0
          %v506 = vrcp.pop %v504
          %v507 = vmul.f32 1.0, %v506
          %v508 = vrcp.pop %v505
          %v509 = vmul.f32 1.0, %v508
          %v510 = vmul.f32 %v413, %v507
          %v511 = vmul.f32 %v415, %v509
          %v512 = vadd.f32 %v510, %v331
          %v513 = vadd.f32 %v511, %v332
          %v514 = vld [vmem:[#allocation3] sm:$0xff]
          %v515 = vld [vmem:[#allocation3 + $0x8] sm:$0xff]
          %v516 = vld [vmem:[#allocation3 + $0x10] sm:$0xff]
          %v517 = vld [vmem:[#allocation3 + $0x18] sm:$0xff]
          %v518 = vld [vmem:[#allocation3 + $0x20] sm:$0xff]
          %v519 = vld [vmem:[#allocation3 + $0x28] sm:$0xff]
          %v520 = vld [vmem:[#allocation3 + $0x30] sm:$0xff]
          %v521 = vld [vmem:[#allocation3 + $0x38] sm:$0xff]
          %v522 = vld [vmem:[#allocation3 + $0x40] sm:$0xff]
          %v523 = vld [vmem:[#allocation3 + $0x48] sm:$0xff]
          %v524 = vld [vmem:[#allocation3 + $0x50] sm:$0xff]
          %v525 = vld [vmem:[#allocation3 + $0x58] sm:$0xff]
          %v526 = vld [vmem:[#allocation3 + $0x60] sm:$0xff]
          %v527 = vld [vmem:[#allocation3 + $0x68] sm:$0xff]
          %v528 = vld [vmem:[#allocation3 + $0x70] sm:$0xff]
          %v529 = vld [vmem:[#allocation3 + $0x78] sm:$0xff]
          %v530 = vld [vmem:[#allocation3 + $0x80] sm:$0xff]
          %v531 = vld [vmem:[#allocation3 + $0x88] sm:$0xff]
          %v532 = vld [vmem:[#allocation3 + $0x90] sm:$0xff]
          %v533 = vld [vmem:[#allocation3 + $0x98] sm:$0xff]
          %v534 = vld [vmem:[#allocation3 + $0xa0] sm:$0xff]
          %v535 = vld [vmem:[#allocation3 + $0xa8] sm:$0xff]
          %v536 = vld [vmem:[#allocation3 + $0xb0] sm:$0xff]
          %v537 = vld [vmem:[#allocation3 + $0xb8] sm:$0xff]
          %v538 = vld [vmem:[#allocation3 + $0xc0] sm:$0xff]
          %v539 = vld [vmem:[#allocation3 + $0xc8] sm:$0xff]
          %v540 = vld [vmem:[#allocation3 + $0xd0] sm:$0xff]
          %v541 = vld [vmem:[#allocation3 + $0xd8] sm:$0xff]
          %v542 = vld [vmem:[#allocation3 + $0xe0] sm:$0xff]
          %v543 = vld [vmem:[#allocation3 + $0xe8] sm:$0xff]
          %v544 = vld [vmem:[#allocation3 + $0xf0] sm:$0xff]
          %v545 = vld [vmem:[#allocation3 + $0xf8] sm:$0xff]
          %v546 = vld [vmem:[#allocation3 + $0x100] sm:$0xff]
          %v547 = vld [vmem:[#allocation3 + $0x108] sm:$0xff]
          %v548 = vld [vmem:[#allocation3 + $0x110] sm:$0xff]
          %v549 = vld [vmem:[#allocation3 + $0x118] sm:$0xff]
          %v550 = vld [vmem:[#allocation3 + $0x120] sm:$0xff]
          %v551 = vld [vmem:[#allocation3 + $0x128] sm:$0xff]
          %v552 = vld [vmem:[#allocation3 + $0x130] sm:$0xff]
          %v553 = vld [vmem:[#allocation3 + $0x138] sm:$0xff]
          %v554 = vld [vmem:[#allocation3 + $0x140] sm:$0xff]
          %v555 = vld [vmem:[#allocation3 + $0x148] sm:$0xff]
          %v556 = vld [vmem:[#allocation3 + $0x150] sm:$0xff]
          %v557 = vld [vmem:[#allocation3 + $0x158] sm:$0xff]
          %v558 = vld [vmem:[#allocation3 + $0x160] sm:$0xff]
          %v559 = vld [vmem:[#allocation3 + $0x168] sm:$0xff]
          %v560 = vld [vmem:[#allocation3 + $0x170] sm:$0xff]
          %v561 = vld [vmem:[#allocation3 + $0x178] sm:$0xff]
          %v562 = vld [vmem:[#allocation3 + $0x180] sm:$0xff]
          %v563 = vld [vmem:[#allocation3 + $0x188] sm:$0xff]
          %v564 = vld [vmem:[#allocation3 + $0x190] sm:$0xff]
          %v565 = vld [vmem:[#allocation3 + $0x198] sm:$0xff]
          %v566 = vld [vmem:[#allocation3 + $0x1a0] sm:$0xff]
          %v567 = vld [vmem:[#allocation3 + $0x1a8] sm:$0xff]
          %v568 = vld [vmem:[#allocation3 + $0x1b0] sm:$0xff]
          %v569 = vld [vmem:[#allocation3 + $0x1b8] sm:$0xff]
          %v570 = vld [vmem:[#allocation3 + $0x1c0] sm:$0xff]
          %v571 = vld [vmem:[#allocation3 + $0x1c8] sm:$0xff]
          %v572 = vld [vmem:[#allocation3 + $0x1d0] sm:$0xff]
          %v573 = vld [vmem:[#allocation3 + $0x1d8] sm:$0xff]
          %v574 = vld [vmem:[#allocation3 + $0x1e0] sm:$0xff]
          %v575 = vld [vmem:[#allocation3 + $0x1e8] sm:$0xff]
          %v576 = vld [vmem:[#allocation3 + $0x1f0] sm:$0xff]
          %v577 = vld [vmem:[#allocation3 + $0x1f8] sm:$0xff]
          %578 = vmatprep.subr.mxu0 %v515
          %579 = vmatpush1.msra.mxu0 %v514
          %580 = vmatprep.subr.mxu0 %v517
          %581 = vmatpush1.msra.mxu0 %v516
          %582 = vmatprep.subr.mxu0 %v519
          %583 = vmatpush1.msra.mxu0 %v518
          %584 = vmatprep.subr.mxu0 %v521
          %585 = vmatpush1.msra.mxu0 %v520
          %586 = vmatprep.subr.mxu0 %v523
          %587 = vmatpush1.msra.mxu0 %v522
          %588 = vmatprep.subr.mxu0 %v525
          %589 = vmatpush1.msra.mxu0 %v524
          %590 = vmatprep.subr.mxu0 %v527
          %591 = vmatpush1.msra.mxu0 %v526
          %592 = vmatprep.subr.mxu0 %v529
          %593 = vmatpush1.msra.mxu0 %v528
          %594 = vmatprep.subr.mxu0 %v531
          %595 = vmatpush1.msra.mxu0 %v530
          %596 = vmatprep.subr.mxu0 %v533
          %597 = vmatpush1.msra.mxu0 %v532
          %598 = vmatprep.subr.mxu0 %v535
          %599 = vmatpush1.msra.mxu0 %v534
          %600 = vmatprep.subr.mxu0 %v537
          %601 = vmatpush1.msra.mxu0 %v536
          %602 = vmatprep.subr.mxu0 %v539
          %603 = vmatpush1.msra.mxu0 %v538
          %604 = vmatprep.subr.mxu0 %v541
          %605 = vmatpush1.msra.mxu0 %v540
          %606 = vmatprep.subr.mxu0 %v543
          %607 = vmatpush1.msra.mxu0 %v542
          %608 = vmatprep.subr.mxu0 %v545
          %609 = vmatpush1.msra.mxu0 %v544
          %610 = vmatprep.subr.mxu0 %v547
          %611 = vmatpush1.msra.mxu0 %v546
          %612 = vmatprep.subr.mxu0 %v549
          %613 = vmatpush1.msra.mxu0 %v548
          %614 = vmatprep.subr.mxu0 %v551
          %615 = vmatpush1.msra.mxu0 %v550
          %616 = vmatprep.subr.mxu0 %v553
          %617 = vmatpush1.msra.mxu0 %v552
          %618 = vmatprep.subr.mxu0 %v555
          %619 = vmatpush1.msra.mxu0 %v554
          %620 = vmatprep.subr.mxu0 %v557
          %621 = vmatpush1.msra.mxu0 %v556
          %622 = vmatprep.subr.mxu0 %v559
          %623 = vmatpush1.msra.mxu0 %v558
          %624 = vmatprep.subr.mxu0 %v561
          %625 = vmatpush1.msra.mxu0 %v560
          %626 = vmatprep.subr.mxu0 %v563
          %627 = vmatpush1.msra.mxu0 %v562
          %628 = vmatprep.subr.mxu0 %v565
          %629 = vmatpush1.msra.mxu0 %v564
          %630 = vmatprep.subr.mxu0 %v567
          %631 = vmatpush1.msra.mxu0 %v566
          %632 = vmatprep.subr.mxu0 %v569
          %633 = vmatpush1.msra.mxu0 %v568
          %634 = vmatprep.subr.mxu0 %v571
          %635 = vmatpush1.msra.mxu0 %v570
          %636 = vmatprep.subr.mxu0 %v573
          %637 = vmatpush1.msra.mxu0 %v572
          %638 = vmatprep.subr.mxu0 %v575
          %639 = vmatpush1.msra.mxu0 %v574
          %640 = vmatprep.subr.mxu0 %v577
          %641 = vmatpush1.msra.mxu0 %v576
          %642 = vmatprep.mubr.f32.mxu0 %v513
          %643 = vmatmul.mubr.f32.gmra.mrb[0].mxu0 %v512
          %v644 = vpop.f32.mrb[0].mxu0
          %v645 = vadd.f32 0.0, %v644
          %v646 = vpop.f32.mrb[0].mxu0
          %v647 = vadd.f32 0.0, %v646
          %648 = vdwg.mxu0
          %649 = vst [vmem:[#allocation2] sm:$0xff] %v645
          %650 = vst [vmem:[#allocation2 + $0x8] sm:$0xff] %v647
        $region56: #{tpu_custom_call.1} parent=47 // pred_fallthru
          _
        %s651 = smul.u32 %s28, 8
        %s652 = sshra.s32 %s651, 3
        %s653 = sand.u32 %s651, 7
        %s654 = smul.u32 %s652, 2
        %s655 = smul.addr %s654, 8
        %s656 = scalar_lea.vmem [#allocation2], %s655
        %v657 = vld [vmem:[%s656] sm:$0xff]
        %v658 = vld [vmem:[%s656 + $0x8] sm:$0xff]
        %659 = vst [vmem:[%s316] sm:$0xff] %v657
        %660 = vst [vmem:[%s316 + $0x8] sm:$0xff] %v658
        %s661 = sand.u32 %s202, 1
        %s662 = scalar_lea.sflag [#allocation5], %s661
        %s663 = sand.u32 %s202, 1
        %s664 = smul.addr %s663, 16
        %s665 = scalar_lea.vmem [#allocation6], %s664
        // Predicated region
        $region57: #{tpu_custom_call.1} parent=47 // pred_check
          %p666 = pneg %p212
        $region58: #{tpu_custom_call.1} parent=47 // pred_check_branch
          %668 = sbr.rel (%p666) target = $region60
        $region59: #{tpu_custom_call.1} parent=47 // pred_region
          %s670 = ssub.s32 256, 256
          %671 = vsyncadd %s662, %s670
          %s672 = smul.addr %s28, 2
          %s673 = smul.addr %s27, 6
          %s674 = sadd.s32 %s672, %s673
          %s675 = smul.addr %s674, 128
          %s676 = scalar_lea.hbm %s8, %s675
          %s678 = sshll.u32 %s665, 4
          %s679 = int_to_ptr.vmem [resolvable:$true] %s678
          %681 = dma.vmem_to_hbm [thread:$0]  %s679, 256, %s676, %s662
        $region60: #{tpu_custom_call.1} parent=47 // pred_fallthru
          _
      $region48: #{tpu_custom_call.1} parent=5 // pred_fallthru
        _
      %p682 = scmp.le.s32.totalorder 2, %s18
      // Predicated region
      $region61: #{tpu_custom_call.1} parent=5 // pred_check
        %p683 = pneg %p682
      $region62: #{tpu_custom_call.1} parent=5 // pred_check_branch
        %685 = sbr.rel (%p683) target = $region64
      $region63: #{tpu_custom_call.1} parent=5 // pred_region
        %s686 = ssub.s32 %s18, 2
        // Predicated region
        $region65: #{tpu_custom_call.1} parent=63 // pred_check
          %p687 = pneg %p218
        $region66: #{tpu_custom_call.1} parent=63 // pred_check_branch
          %689 = sbr.rel (%p687) target = $region68
        $region67: #{tpu_custom_call.1} parent=63 // pred_region
          %s690 = sand.u32 %s203, 1
          %s691 = scalar_lea.sflag [#allocation5], %s690
          %s692 = sand.u32 %s203, 1
          %s693 = smul.addr %s692, 16
          %s694 = scalar_lea.vmem [#allocation6], %s693
          %695 = dma.done %s691, 256
        $region68: #{tpu_custom_call.1} parent=63 // pred_fallthru
          _
      $region64: #{tpu_custom_call.1} parent=5 // pred_fallthru
        _
    $region6: #{tpu_custom_call.1} parent=1 // loop_footer
      %s22 = sadd.s32 1, %s18
    $region7: #{tpu_custom_call.1} parent=1 // loop_footer_branch
      %17 = sbr.rel target = $region3
    $region8: #{tpu_custom_call.1} parent=1 // loop_exit
      _
    %696 = vsyncpa [#allocation4], 1
    %s697 = scalar_lea.sflag [#allocation4], 1
    %698 = vsyncpa %s697, 1
    %699 = vsyncpa [#allocation5], 1
    %s700 = scalar_lea.sflag [#allocation5], 1
    %701 = vsyncpa %s700, 1

</llo_original>
